<compile_context>
chip_gen: v6e
topology: v6e:2x2x1
jax: 0.10.0
libtpu: 0.0.40
codegen_flags: <defaults>
</compile_context>

<pallas_src>
import functools

import jax
import jax.numpy as jnp
from jax.experimental import pallas as pl
from jax.experimental.pallas import tpu as pltpu

_EPS = 1e-6
_LANES = 128
_SUBLANES = 8
# Per-input f32 block budget.  3 streams (x, smoother, out) x 2 pipeline
# buffers x 4 MiB = 24 MiB of VMEM; vmem_limit_bytes is set explicitly below.
_BLOCK_BYTES = 4 * 1024 * 1024


def _round_up(v, m):
    return ((v + m - 1) // m) * m


def _round_down(v, m):
    return (v // m) * m


def _pcen_kernel(params_ref, x_ref, s_ref, o_ref, *, bf16_transcendentals=False):
    # params_ref (SMEM, f32[4]): [-alpha, delta, r, delta ** r]
    neg_alpha = params_ref[0]
    delta = params_ref[1]
    r = params_ref[2]
    delta_pow_r = params_ref[3]

    x = x_ref[...].astype(jnp.float32)
    s = s_ref[...].astype(jnp.float32)

    # Optional v6e/v7x accuracy/speed trade: bf16 EUP transcendentals run ~2x
    # faster than f32; disabled by default to preserve ~1e-5 accuracy.
    cdt = jnp.bfloat16 if bf16_transcendentals else jnp.float32

    # smooth = (eps + smoother) ** (-alpha)   (EUP exp/log path)
    smooth = jnp.exp(
        neg_alpha.astype(cdt) * jnp.log((_EPS + s).astype(cdt))
    ).astype(jnp.float32)
    base = x * smooth + delta
    # pcen = base ** r - delta ** r   (delta ** r hoisted to the wrapper)
    pcen = jnp.exp(
        r.astype(cdt) * jnp.log(base.astype(cdt))
    ).astype(jnp.float32) - delta_pow_r

    o_ref[...] = pcen.astype(o_ref.dtype)


def _pick_block_rows(rows, width):
    """Choose the block-row count for a (rows, width) f32 slab.

    Rules: multiple of 8 (or full extent for tiny inputs), one f32 input block
    <= _BLOCK_BYTES, and -- once rows >= 16 -- a grid of at least 2 (even
    preferred) so v7x's two TensorCores both get balanced work.  The grid uses
    cdiv, so block_rows does NOT need to divide rows (ragged last block).
    """
    if rows < 2 * _SUBLANES:
        return rows  # tiny input: one full-extent block, grid = 1
    cap = max(_SUBLANES, _round_down(_BLOCK_BYTES // (width * 4), _SUBLANES))
    # min(...) with ceil(rows/2) guarantees block_rows < rows => grid >= 2.
    br = min(cap, _round_up(pl.cdiv(rows, 2), _SUBLANES))
    g = pl.cdiv(rows, br)
    if g > 1 and g % 2:  # prefer an even step count for megacore balance
        br_even = _round_up(pl.cdiv(rows, g + 1), _SUBLANES)
        if br_even >= _SUBLANES and pl.cdiv(rows, br_even) % 2 == 0:
            br = br_even
    return br


def _plan_layout(n):
    """Return (rows, width, block_rows, padded_n); padded_n == n => no padding."""
    # Preferred: zero-copy lane-dense layout (widest last dim that divides n).
    for width in (8 * _LANES, 4 * _LANES, 2 * _LANES, _LANES):
        if n % width == 0:
            rows = n // width
            return rows, width, _pick_block_rows(rows, width), n
    # Rare fallback (n % 128 != 0): pad the flat array up to one wide 8*128
    # row.  Still a 1024-wide slab (long DMA bursts, unmasked vst); the ragged
    # grid handles rows % block_rows != 0 without any further padding.
    width = 8 * _LANES
    padded_n = _round_up(n, width)
    rows = padded_n // width
    return rows, width, _pick_block_rows(rows, width), padded_n


@functools.partial(jax.jit, static_argnames=("use_bf16_transcendentals",))
def pcen_forward(x, smoother, alpha, delta, r, use_bf16_transcendentals=False):
    assert x.shape == smoother.shape
    orig_shape = x.shape
    out_dtype = x.dtype
    n = x.size

    rows, width, block_rows, padded_n = _plan_layout(n)
    pad = padded_n - n

    xf = x.reshape(-1)
    sf = smoother.reshape(-1)
    if pad:  # static Python check: only taken when n is not a multiple of 128
        xf = jnp.pad(xf, (0, pad))
        # Pad smoother with 1.0 so padded lanes stay finite (log(1 + eps)).
        sf = jnp.pad(sf, (0, pad), constant_values=1.0)
    xf = xf.reshape(rows, width)
    sf = sf.reshape(rows, width)

    alpha = alpha.reshape(()).astype(jnp.float32)
    delta = delta.reshape(()).astype(jnp.float32)
    r = r.reshape(()).astype(jnp.float32)
    # Hoist -alpha and delta ** r out of the kernel: one fewer exp/log pair
    # per element on the EUP (the binding unit on v7x).
    params = jnp.stack([-alpha, delta, r, delta ** r])

    # Ragged last block: OOB reads feed masked lanes only, OOB stores dropped.
    grid = (pl.cdiv(rows, block_rows),)

    block_bytes = block_rows * width * 4
    # 3 streams x 2 pipeline buffers x block + slack.  Explicit so 4 MiB
    # blocks also fit under v5e's 16 MiB scoped-VMEM default; total stays well
    # under v7x's 64 MiB physical VMEM.
    vmem_limit = max(6 * block_bytes + (4 << 20), 16 << 20)

    kernel = functools.partial(
        _pcen_kernel, bf16_transcendentals=use_bf16_transcendentals
    )

    out = pl.pallas_call(
        kernel,
        out_shape=jax.ShapeDtypeStruct((rows, width), out_dtype),
        grid_spec=pl.GridSpec(
            grid=grid,
            in_specs=[
                pl.BlockSpec(memory_space=pltpu.MemorySpace.SMEM),
                pl.BlockSpec((block_rows, width), lambda i: (i, 0)),
                pl.BlockSpec((block_rows, width), lambda i: (i, 0)),
            ],
            out_specs=pl.BlockSpec((block_rows, width), lambda i: (i, 0)),
        ),
        compiler_params=pltpu.CompilerParams(
            dimension_semantics=("parallel",),
            vmem_limit_bytes=int(vmem_limit),
        ),
    )(params, xf, sf)

    if pad:
        return out.reshape(-1)[:n].reshape(orig_shape)
    return out.reshape(orig_shape)


def pcen_reference(x, smoother, alpha, delta, r):
    smooth = (_EPS + smoother) ** (-alpha)
    return (x * smooth + delta) ** r - delta ** r


if __name__ == "__main__":
    # Deterministic parameter init, matching the module's __init__ values.
    log_alpha = jnp.array([0.98], dtype=jnp.float32)
    log_delta = jnp.array([2.0], dtype=jnp.float32)
    log_r = jnp.array([0.5], dtype=jnp.float32)

    key = jax.random.PRNGKey(0)
    kx, ks = jax.random.split(key)
    # Spectrogram-like NCHW input: batch=2, channels=4, freq=16, time=16.
    x = jax.random.uniform(kx, (2, 4, 16, 16), dtype=jnp.float32)
    smoother = jax.random.uniform(
        ks, (2, 4, 16, 16), dtype=jnp.float32, minval=0.0, maxval=1.0
    )

    out = pcen_forward(x, smoother, log_alpha, log_delta, log_r)
    out = jax.block_until_ready(out)

    ref = pcen_reference(x, smoother, log_alpha[0], log_delta[0], log_r[0])
    assert out.shape == x.shape
    assert out.dtype == x.dtype
    assert jnp.allclose(out, ref, atol=1e-5, rtol=1e-5), (
        float(jnp.max(jnp.abs(out - ref)))
    )
    print("KERNEL_OK")
</pallas_src>

<mosaic_0001>
module attributes {stable_mosaic.version = 11 : i64} {
  func.func @_pcen_kernel(%arg0: i32, %arg1: memref<4xf32, #tpu.memory_space<smem>>, %arg2: memref<2x1024xf32, #tpu.memory_space<vmem>>, %arg3: memref<2x1024xf32, #tpu.memory_space<vmem>>, %arg4: memref<2x1024xf32, #tpu.memory_space<vmem>>) attributes {dimension_semantics = [#tpu.dimension_semantics<parallel>], iteration_bounds = array<i64: 1>, scalar_prefetch = 0 : i64, scratch_operands = 0 : i64, tpu.core_type = #tpu.core_type<tc>, window_params = [{transform_indices = @transform_0, window_bounds = array<i64: 4>}, {transform_indices = @transform_1, window_bounds = array<i64: 2, 1024>}, {transform_indices = @transform_2, window_bounds = array<i64: 2, 1024>}, {transform_indices = @transform_3, window_bounds = array<i64: 2, 1024>}]} {
    %c0 = arith.constant 0 : index
    %0 = memref.load %arg1[%c0] : memref<4xf32, #tpu.memory_space<smem>>
    %c1 = arith.constant 1 : index
    %1 = memref.load %arg1[%c1] : memref<4xf32, #tpu.memory_space<smem>>
    %c2 = arith.constant 2 : index
    %2 = memref.load %arg1[%c2] : memref<4xf32, #tpu.memory_space<smem>>
    %c3 = arith.constant 3 : index
    %3 = memref.load %arg1[%c3] : memref<4xf32, #tpu.memory_space<smem>>
    %c0_0 = arith.constant 0 : index
    %c0_1 = arith.constant 0 : index
    %4 = vector.load %arg2[%c0_0, %c0_1] : memref<2x1024xf32, #tpu.memory_space<vmem>>, vector<2x1024xf32>
    %c0_2 = arith.constant 0 : index
    %c0_3 = arith.constant 0 : index
    %5 = vector.load %arg3[%c0_2, %c0_3] : memref<2x1024xf32, #tpu.memory_space<vmem>>, vector<2x1024xf32>
    %cst = arith.constant 9.99999997E-7 : f32
    %6 = vector.broadcast %cst : f32 to vector<2x1024xf32>
    %7 = arith.addf %6, %5 : vector<2x1024xf32>
    %8 = math.log %7 : vector<2x1024xf32>
    %9 = vector.broadcast %0 : f32 to vector<2x1024xf32>
    %10 = arith.mulf %9, %8 : vector<2x1024xf32>
    %11 = math.exp %10 : vector<2x1024xf32>
    %12 = arith.mulf %4, %11 : vector<2x1024xf32>
    %13 = vector.broadcast %1 : f32 to vector<2x1024xf32>
    %14 = arith.addf %12, %13 : vector<2x1024xf32>
    %15 = math.log %14 : vector<2x1024xf32>
    %16 = vector.broadcast %2 : f32 to vector<2x1024xf32>
    %17 = arith.mulf %16, %15 : vector<2x1024xf32>
    %18 = math.exp %17 : vector<2x1024xf32>
    %19 = vector.broadcast %3 : f32 to vector<2x1024xf32>
    %20 = arith.subf %18, %19 : vector<2x1024xf32>
    %c0_4 = arith.constant 0 : index
    %c0_5 = arith.constant 0 : index
    %21 = vector.load %arg4[%c0_4, %c0_5] : memref<2x1024xf32, #tpu.memory_space<vmem>>, vector<2x1024xf32>
    tpu.vector_store %arg4[%c0_4, %c0_5], %20 {strides = array<i32>} : memref<2x1024xf32, #tpu.memory_space<vmem>>, vector<2x1024xf32>,
    return
  }
  func.func @transform_0(%arg0: i32) -> i32 {
    %c0_i32 = arith.constant 0 : i32
    %c0_i32_0 = arith.constant 0 : i32
    return %c0_i32 : i32
  }
  func.func @transform_1(%arg0: i32) -> (i32, i32) {
    %c0_i32 = arith.constant 0 : i32
    %c0_i32_0 = arith.constant 0 : i32
    return %arg0, %c0_i32 : i32, i32
  }
  func.func @transform_2(%arg0: i32) -> (i32, i32) {
    %c0_i32 = arith.constant 0 : i32
    %c0_i32_0 = arith.constant 0 : i32
    return %arg0, %c0_i32 : i32, i32
  }
  func.func @transform_3(%arg0: i32) -> (i32, i32) {
    %c0_i32 = arith.constant 0 : i32
    %c0_i32_0 = arith.constant 0 : i32
    return %arg0, %c0_i32 : i32, i32
  }
}

</mosaic_0001>

<llo_original>
// kernel: pcen_forward.1
$region0: #{pcen_forward.1}
  #allocation0 [shape = 'u32[]', space=smem, size = 0x4, offset = 0x4, fixed_abs, tag = 'smem constant byte address 0x4 - core index']
  #allocation1 [shape = 'u32[144,128]{1,0:T(1,128)}', space=vmem, size = 0x12000, scoped, tag = 'internal scratch']
  %s0 = inlined_call_operand.vmem [shape: f32[4], index: 0, kind: input, shape index: {}]
  %s1 = inlined_call_operand.vmem [shape: f32[2,1024], index: 1, kind: input, shape index: {}]
  %s2 = inlined_call_operand.vmem [shape: f32[2,1024], index: 2, kind: input, shape index: {}]
  %s3 = inlined_call_operand.vmem [shape: f32[2,1024], index: 3, kind: output, shape index: {}]
  %s4 = sld [smem:[#allocation0]]
  $region26: #{pcen_forward.1} parent=0
    _
  %s6 = ssub.s32 1, %s4
  %s7 = scalar_select 0, %s6, %s4
  $region1: #{pcen_forward.1} parent=0
    #allocation2 [shape = 'u8[512]{0}', space=smem, size = 0x200, scoped, tag = 'input window, operand 0, single buffered']
    #allocation3 [shape = 's32[1]{0}', space=sflag, size = 0x4, scoped, tag = 'scoped memory for pcen_forward.1']
    %8 = vsyncpa [#allocation3], 0
    // Predicated region
    $region2: #{pcen_forward.1} parent=1 // pred_check
      _
    $region3: #{pcen_forward.1} parent=1 // pred_check_branch
      %10 = sbr.rel (0) target = $region5
    $region4: #{pcen_forward.1} parent=1 // pred_region
      %s12 = ssub.s32 16, 16
      %13 = vsyncadd [#allocation3], %s12
      %s15 = sshll.u32 %s0, 4
      %s16 = int_to_ptr.vmem [resolvable:$true] %s15
      %18 = dma.vmem_to_smem %s16, 16, [#allocation2], [#allocation3]
    $region5: #{pcen_forward.1} parent=1 // pred_fallthru
      _
    // Predicated region
    $region6: #{pcen_forward.1} parent=1 // pred_check
      _
    $region7: #{pcen_forward.1} parent=1 // pred_check_branch
      %20 = sbr.rel (0) target = $region9
    $region8: #{pcen_forward.1} parent=1 // pred_region
      _
    $region9: #{pcen_forward.1} parent=1 // pred_fallthru
      _
    // Predicated region
    $region10: #{pcen_forward.1} parent=1 // pred_check
      _
    $region11: #{pcen_forward.1} parent=1 // pred_check_branch
      %22 = sbr.rel (0) target = $region13
    $region12: #{pcen_forward.1} parent=1 // pred_region
      _
    $region13: #{pcen_forward.1} parent=1 // pred_fallthru
      _
    // Predicated region
    $region14: #{pcen_forward.1} parent=1 // pred_check
      _
    $region15: #{pcen_forward.1} parent=1 // pred_check_branch
      %24 = sbr.rel (0) target = $region17
    $region16: #{pcen_forward.1} parent=1 // pred_region
      %25 = dma.done [#allocation3], 16
    $region17: #{pcen_forward.1} parent=1 // pred_fallthru
      _
    %26 = sfence
    %s27 = sld [smem:[#allocation2]]
    %s28 = sld [smem:[#allocation2 + $0x1]]
    %s29 = sld [smem:[#allocation2 + $0x2]]
    %s30 = sld [smem:[#allocation2 + $0x3]]
    %v31 = vld [vmem:[%s1] sm:$0xff]
    %v32 = vld [vmem:[%s1 + $0x8] sm:$0xff]
    %v33 = vld [vmem:[%s2] sm:$0xff]
    %v34 = vld [vmem:[%s2 + $0x8] sm:$0xff]
    %v35 = vadd.f32 %v33, 1e-06
    %v36 = vadd.f32 %v34, 1e-06
    %v37 = vlog2.pop %v35
    %v38 = vmul.f32 %v37, 0.6931472
    %v39 = vlog2.pop %v36
    %v40 = vmul.f32 %v39, 0.6931472
    %v41 = vstv %s27
    %v42 = vmul.f32 %v41, %v38
    %v43 = vmul.f32 %v41, %v40
    %v44 = vmul.f32 %v42, 1.442695
    %v45 = vpow.pop %v44
    %v46 = vmul.f32 %v43, 1.442695
    %v47 = vpow.pop %v46
    %v48 = vmul.f32 %v31, %v45
    %v49 = vmul.f32 %v32, %v47
    %v50 = vstv %s28
    %v51 = vadd.f32 %v48, %v50
    %v52 = vadd.f32 %v49, %v50
    %v53 = vlog2.pop %v51
    %v54 = vmul.f32 %v53, 0.6931472
    %v55 = vlog2.pop %v52
    %v56 = vmul.f32 %v55, 0.6931472
    %v57 = vstv %s29
    %v58 = vmul.f32 %v57, %v54
    %v59 = vmul.f32 %v57, %v56
    %v60 = vmul.f32 %v58, 1.442695
    %v61 = vpow.pop %v60
    %v62 = vmul.f32 %v59, 1.442695
    %v63 = vpow.pop %v62
    %v64 = vstv %s30
    %v65 = vsub.f32 %v61, %v64
    %v66 = vsub.f32 %v63, %v64
    %67 = vst [vmem:[%s3] sm:$0xff] %v65
    %68 = vst [vmem:[%s3 + $0x8] sm:$0xff] %v66
    // Predicated region
    $region18: #{pcen_forward.1} parent=1 // pred_check
      _
    $region19: #{pcen_forward.1} parent=1 // pred_check_branch
      %70 = sbr.rel (0) target = $region21
    $region20: #{pcen_forward.1} parent=1 // pred_region
      _
    $region21: #{pcen_forward.1} parent=1 // pred_fallthru
      _
    // Predicated region
    $region22: #{pcen_forward.1} parent=1 // pred_check
      _
    $region23: #{pcen_forward.1} parent=1 // pred_check_branch
      %72 = sbr.rel (0) target = $region25
    $region24: #{pcen_forward.1} parent=1 // pred_region
      _
    $region25: #{pcen_forward.1} parent=1 // pred_fallthru
      _
    %73 = vsyncpa [#allocation3], 1

</llo_original>
